<compile_context>
chip_gen: v7x
topology: tpu7x:2x2x1
jax: 0.10.0
libtpu: 0.0.40
codegen_flags: <defaults>
</compile_context>

<pallas_src>
import functools

import jax
import jax.numpy as jnp
from jax.experimental import pallas as pl
from jax.experimental.pallas import tpu as pltpu


def _round_up(x, m):
    return ((x + m - 1) // m) * m


def _sublane(dtype):
    """Minimum sublane granularity for a dtype (sub-32-bit packs along sublanes)."""
    itemsize = jnp.dtype(dtype).itemsize
    return {4: 8, 2: 16, 1: 32}.get(itemsize, 8)


# ---------------------------------------------------------------------------
# Kernel 1: tiled forward of the wrapped Linear module  y = x @ W^T + b
# ---------------------------------------------------------------------------
def linear_kernel(x_ref, w_ref, b_ref, o_ref, acc_ref):
    k = pl.program_id(2)

    @pl.when(k == 0)
    def _():
        acc_ref[...] = jnp.zeros_like(acc_ref)

    # x tile (tm, tk) @ wT tile (tk, tn): the weight was transposed once in
    # the wrapper to [K, N], so this is the MXU-native contraction and no
    # per-step XLU transpose is emitted.
    acc_ref[...] += jnp.dot(
        x_ref[...], w_ref[...], preferred_element_type=jnp.float32
    )

    @pl.when(k == pl.num_programs(2) - 1)
    def _():
        # Bias added exactly once, on the f32 accumulator, then cast.
        o_ref[...] = (acc_ref[...] + b_ref[...].astype(jnp.float32)).astype(
            o_ref.dtype
        )


def l1_linear_forward(x, w, b, *, tm=512, tn=512, tk=1024, operand_dtype=None):
    """y = x @ w.T + b with x: [..., K], w: [N, K] (PyTorch layout), b: [N]."""
    *lead, K = x.shape
    N, K2 = w.shape
    assert K == K2 and b.shape == (N,)
    out_dtype = x.dtype

    x2 = x.reshape(-1, K)
    M = x2.shape[0]

    # One-time transpose of the (static) weight to [K, N]: keeps N lane-dense
    # inside the kernel and removes repeated W-tile transposes from the K loop.
    wt = w.T

    if operand_dtype is not None:
        # Optional low-precision MXU operands; accumulation stays f32.
        x2 = x2.astype(operand_dtype)
        wt = wt.astype(operand_dtype)

    sub = _sublane(x2.dtype)
    # Clamp tile sizes to the (padded) problem size, keep (sublane, 128) tiling.
    tm = min(tm, _round_up(M, sub))
    tn = min(tn, _round_up(N, 128))
    tk = min(tk, _round_up(K, 128))
    Mp, Np, Kp = _round_up(M, tm), _round_up(N, tn), _round_up(K, tk)

    # Zero-pad only when needed (zero K-padding is safe for the accumulation).
    # TODO(synk): in a real training loop, pre-pad/transpose the static weight
    # and bias once outside this call so only the activation ever gets padded.
    if (Mp, Kp) != (M, K):
        x2 = jnp.pad(x2, ((0, Mp - M), (0, Kp - K)))
    if (Kp, Np) != (K, N):
        wt = jnp.pad(wt, ((0, Kp - K), (0, Np - N)))
    b2d = (jnp.pad(b, (0, Np - N)) if Np != N else b).reshape(1, Np)

    grid = (Mp // tm, Np // tn, Kp // tk)

    out = pl.pallas_call(
        linear_kernel,
        out_shape=jax.ShapeDtypeStruct((Mp, Np), out_dtype),
        grid=grid,
        in_specs=[
            pl.BlockSpec((tm, tk), lambda i, j, k: (i, k)),   # x
            pl.BlockSpec((tk, tn), lambda i, j, k: (k, j)),   # w^T  [K, N]
            pl.BlockSpec((1, tn), lambda i, j, k: (0, j)),    # bias
        ],
        out_specs=pl.BlockSpec((tm, tn), lambda i, j, k: (i, j)),
        scratch_shapes=[pltpu.VMEM((tm, tn), jnp.float32)],
        compiler_params=pltpu.CompilerParams(
            dimension_semantics=("parallel", "parallel", "arbitrary"),
            vmem_limit_bytes=32 * 1024 * 1024,
        ),
    )(x2, wt, b2d)

    if (Mp, Np) != (M, N):
        out = out[:M, :N]
    return out.reshape(*lead, N)


# ---------------------------------------------------------------------------
# Kernel 2: L1 regularizer used by the backward hook: grad = wd * sign(param)
# (The hook registration itself is an autograd mechanism; only its math is
#  implemented here.)
# ---------------------------------------------------------------------------
def l1_reg_kernel(p_ref, o_ref, *, weight_decay):
    # In-dtype elementwise math: wd * sign(p) is exactly {-wd, 0, +wd} either
    # way, and staying in-dtype keeps vregs dense for bf16/int8 params.
    o_ref[...] = (weight_decay * jnp.sign(p_ref[...])).astype(o_ref.dtype)


def l1_regularize(param, weight_decay, *, block_r=256, block_c=2048):
    orig_shape = param.shape
    p2 = param.reshape(1, -1) if param.ndim != 2 else param
    R, C = p2.shape
    sub = _sublane(p2.dtype)

    # Block = full dim (always legal) or a (sublane x 128)-aligned tile.
    # No wrapper-side pad/slice: ragged edge blocks use Pallas' masked
    # loads/stores, and sign() is elementwise so out-of-bounds garbage never
    # pollutes a valid output element.
    br = R if R <= block_r else max((block_r // sub) * sub, sub)
    bc = C if C <= block_c else max((block_c // 128) * 128, 128)

    out = pl.pallas_call(
        functools.partial(l1_reg_kernel, weight_decay=float(weight_decay)),
        out_shape=jax.ShapeDtypeStruct((R, C), param.dtype),
        grid=(pl.cdiv(R, br), pl.cdiv(C, bc)),
        in_specs=[pl.BlockSpec((br, bc), lambda i, j: (i, j))],
        out_specs=pl.BlockSpec((br, bc), lambda i, j: (i, j)),
        compiler_params=pltpu.CompilerParams(
            dimension_semantics=("parallel", "parallel")
        ),
    )(p2)

    return out.reshape(orig_shape)


# ---------------------------------------------------------------------------
# Plain-JAX references for correctness checking
# ---------------------------------------------------------------------------
def linear_ref(x, w, b):
    return x @ w.T + b


def reg_ref(p, wd):
    return (wd * jnp.sign(p)).astype(p.dtype)


if __name__ == "__main__":
    key = jax.random.PRNGKey(0)
    kx, kw, kb = jax.random.split(key, 3)

    # Small, lane-dense shapes for the demo.
    batch, in_features, out_features = 128, 512, 256
    weight_decay = 0.01

    x = jax.random.normal(kx, (batch, in_features), dtype=jnp.float32)
    # Deterministic init of the wrapped Linear's parameters (synthetic).
    w = jax.random.normal(kw, (out_features, in_features), dtype=jnp.float32) * 0.1
    b = jax.random.normal(kb, (out_features,), dtype=jnp.float32) * 0.1

    y_ref = linear_ref(x, w, b)

    # Forward pass of L1(module=Linear): identical to the module's forward.
    # (a) production-default tiles (clamped to the problem -> 1x1x1 grid)
    y_big = l1_linear_forward(x, w, b)
    # (b) small tiles to exercise the 3-D (parallel, parallel, arbitrary) grid
    #     (2x2x2) and the K-step accumulator init/finalize path.
    y_small = l1_linear_forward(x, w, b, tm=64, tn=128, tk=256)
    # (c) optional bf16 MXU operands (f32 accumulation retained).
    y_bf16 = l1_linear_forward(x, w, b, operand_dtype=jnp.bfloat16)
    jax.block_until_ready((y_big, y_small, y_bf16))

    assert jnp.allclose(y_big, y_ref, atol=1e-4, rtol=1e-4)
    assert jnp.allclose(y_small, y_ref, atol=1e-4, rtol=1e-4)
    assert jnp.allclose(y_bf16, y_ref, atol=0.1, rtol=5e-2)

    # The L1 hook's compute (weight_decay * sign(param)) for each parameter.
    gw = l1_regularize(w, weight_decay)
    gb = l1_regularize(b, weight_decay)
    # Non-dividing blocks exercise masked edge tiles (no wrapper pad/slice).
    gw_ragged = l1_regularize(w, weight_decay, block_r=96, block_c=256)
    # bf16 params exercise dtype-aware sublane granularity + in-dtype math.
    w_bf16 = w.astype(jnp.bfloat16)
    gw_bf16 = l1_regularize(w_bf16, weight_decay)
    jax.block_until_ready((gw, gb, gw_ragged, gw_bf16))

    assert jnp.allclose(gw, reg_ref(w, weight_decay), atol=0.0)
    assert jnp.allclose(gb, reg_ref(b, weight_decay), atol=0.0)
    assert jnp.allclose(gw_ragged, reg_ref(w, weight_decay), atol=0.0)
    assert jnp.allclose(
        gw_bf16.astype(jnp.float32),
        reg_ref(w_bf16, weight_decay).astype(jnp.float32),
        atol=0.0,
    )

    # TODO(synk): the autograd backward-hook registration itself has no Pallas
    # equivalent; only its math (weight_decay * sign(param)) is implemented.

    print("KERNEL_OK")
</pallas_src>

<mosaic_0001>
module attributes {stable_mosaic.version = 11 : i64} {
  func.func @linear_kernel(%arg0: i32, %arg1: i32, %arg2: i32, %arg3: memref<128x512xf32, #tpu.memory_space<vmem>>, %arg4: memref<512x256xf32, #tpu.memory_space<vmem>>, %arg5: memref<1x256xf32, #tpu.memory_space<vmem>>, %arg6: memref<128x256xf32, #tpu.memory_space<vmem>>, %arg7: memref<128x256xf32, #tpu.memory_space<vmem>>) attributes {dimension_semantics = [#tpu.dimension_semantics<parallel>, #tpu.dimension_semantics<parallel>, #tpu.dimension_semantics<arbitrary>], iteration_bounds = array<i64: 1, 1, 1>, scalar_prefetch = 0 : i64, scratch_operands = 1 : i64, tpu.core_type = #tpu.core_type<tc>, window_params = [{transform_indices = @transform_0, window_bounds = array<i64: 128, 512>}, {transform_indices = @transform_1, window_bounds = array<i64: 512, 256>}, {transform_indices = @transform_2, window_bounds = array<i64: 1, 256>}, {transform_indices = @transform_3, window_bounds = array<i64: 128, 256>}]} {
    %c0_i32 = arith.constant 0 : i32
    %0 = arith.cmpi eq, %arg2, %c0_i32 : i32
    %1 = arith.extui %0 : i1 to i32
    %c0_i32_0 = arith.constant 0 : i32
    %2 = arith.cmpi ne, %1, %c0_i32_0 : i32
    scf.if %2 {
      %cst_10 = arith.constant 0.000000e+00 : f32
      %12 = vector.broadcast %cst_10 : f32 to vector<128x256xf32>
      %c0_11 = arith.constant 0 : index
      %c0_12 = arith.constant 0 : index
      %13 = vector.load %arg7[%c0_11, %c0_12] : memref<128x256xf32, #tpu.memory_space<vmem>>, vector<128x256xf32>
      tpu.vector_store %arg7[%c0_11, %c0_12], %12 {strides = array<i32>} : memref<128x256xf32, #tpu.memory_space<vmem>>, vector<128x256xf32>,
    } else {
    }
    %c0 = arith.constant 0 : index
    %c0_1 = arith.constant 0 : index
    %3 = vector.load %arg7[%c0, %c0_1] : memref<128x256xf32, #tpu.memory_space<vmem>>, vector<128x256xf32>
    %c0_2 = arith.constant 0 : index
    %c0_3 = arith.constant 0 : index
    %4 = vector.load %arg3[%c0_2, %c0_3] : memref<128x512xf32, #tpu.memory_space<vmem>>, vector<128x512xf32>
    %c0_4 = arith.constant 0 : index
    %c0_5 = arith.constant 0 : index
    %5 = vector.load %arg4[%c0_4, %c0_5] : memref<512x256xf32, #tpu.memory_space<vmem>>, vector<512x256xf32>
    %cst = arith.constant dense<0.000000e+00> : vector<128x256xf32>
    %6 = tpu.matmul %4, %5, %cst {dimension_numbers = #tpu.dot_dimension_numbers<[1], [0], [0], [1], [0, 0, 1, 1], [], []>} : vector<128x512xf32>, vector<512x256xf32>, vector<128x256xf32> -> vector<128x256xf32>
    %7 = arith.addf %3, %6 : vector<128x256xf32>
    %c0_6 = arith.constant 0 : index
    %c0_7 = arith.constant 0 : index
    %8 = vector.load %arg7[%c0_6, %c0_7] : memref<128x256xf32, #tpu.memory_space<vmem>>, vector<128x256xf32>
    tpu.vector_store %arg7[%c0_6, %c0_7], %7 {strides = array<i32>} : memref<128x256xf32, #tpu.memory_space<vmem>>, vector<128x256xf32>,
    %c0_i32_8 = arith.constant 0 : i32
    %9 = arith.cmpi eq, %arg2, %c0_i32_8 : i32
    %10 = arith.extui %9 : i1 to i32
    %c0_i32_9 = arith.constant 0 : i32
    %11 = arith.cmpi ne, %10, %c0_i32_9 : i32
    scf.if %11 {
      %c0_10 = arith.constant 0 : index
      %c0_11 = arith.constant 0 : index
      %12 = vector.load %arg7[%c0_10, %c0_11] : memref<128x256xf32, #tpu.memory_space<vmem>>, vector<128x256xf32>
      %c0_12 = arith.constant 0 : index
      %c0_13 = arith.constant 0 : index
      %13 = vector.load %arg5[%c0_12, %c0_13] : memref<1x256xf32, #tpu.memory_space<vmem>>, vector<1x256xf32>
      %14 = vector.broadcast %13 : vector<1x256xf32> to vector<128x256xf32>
      %15 = arith.addf %12, %14 : vector<128x256xf32>
      %c0_14 = arith.constant 0 : index
      %c0_15 = arith.constant 0 : index
      %16 = vector.load %arg6[%c0_14, %c0_15] : memref<128x256xf32, #tpu.memory_space<vmem>>, vector<128x256xf32>
      tpu.vector_store %arg6[%c0_14, %c0_15], %15 {strides = array<i32>} : memref<128x256xf32, #tpu.memory_space<vmem>>, vector<128x256xf32>,
    } else {
    }
    return
  }
  func.func @transform_0(%arg0: i32, %arg1: i32, %arg2: i32) -> (i32, i32) {
    %c0_i32 = arith.constant 0 : i32
    return %arg0, %arg2 : i32, i32
  }
  func.func @transform_1(%arg0: i32, %arg1: i32, %arg2: i32) -> (i32, i32) {
    %c0_i32 = arith.constant 0 : i32
    return %arg2, %arg1 : i32, i32
  }
  func.func @transform_2(%arg0: i32, %arg1: i32, %arg2: i32) -> (i32, i32) {
    %c0_i32 = arith.constant 0 : i32
    %c0_i32_0 = arith.constant 0 : i32
    return %c0_i32, %arg1 : i32, i32
  }
  func.func @transform_3(%arg0: i32, %arg1: i32, %arg2: i32) -> (i32, i32) {
    %c0_i32 = arith.constant 0 : i32
    return %arg0, %arg1 : i32, i32
  }
}

</mosaic_0001>

<llo_original>
// kernel: tpu_custom_call.1
$region0: #{tpu_custom_call.1}
  #allocation0 [shape = 'u32[]', space=smem, size = 0x4, offset = 0x4, fixed_abs, tag = 'smem constant byte address 0x4 - core index']
  #allocation1 [shape = 'u32[144,128]{1,0:T(1,128)}', space=vmem, size = 0x12000, scoped, tag = 'internal scratch']
  #allocation2 [shape = 'f32[128,256]{1,0:T(8,128)}', space=vmem, size = 0x20000, scoped, tag = 'scratch operand']
  %s0 = inlined_call_operand.hbm [shape: f32[128,512], index: 0, kind: input, shape index: {}]
  %s1 = inlined_call_operand.hbm [shape: f32[512,256], index: 1, kind: input, shape index: {}]
  %s2 = inlined_call_operand.vmem [shape: f32[1,256], index: 2, kind: input, shape index: {}]
  %s3 = inlined_call_operand.hbm [shape: f32[128,256], index: 3, kind: output, shape index: {}]
  %s4 = sld [smem:[#allocation0]]
  $region38: #{tpu_custom_call.1} parent=0
    _
  %s6 = ssub.s32 1, %s4
  %s7 = scalar_select 0, %s6, %s4
  $region1: #{tpu_custom_call.1} parent=0
    #allocation3 [shape = 'u8[262144]{0}', space=vmem, size = 0x40000, scoped, tag = 'input window, operand 0, single buffered']
    #allocation4 [shape = 's32[1]{0}', space=sflag, size = 0x4, scoped, tag = 'scoped memory for tpu_custom_call.1']
    #allocation5 [shape = 's32[1]{0}', space=sflag, size = 0x4, scoped, tag = 'scoped memory for tpu_custom_call.1']
    #allocation6 [shape = 'u8[524288]{0}', space=vmem, size = 0x80000, scoped, tag = 'input window, operand 1, single buffered']
    #allocation7 [shape = 's32[1]{0}', space=sflag, size = 0x4, scoped, tag = 'scoped memory for tpu_custom_call.1']
    #allocation8 [shape = 'u8[131072]{0}', space=vmem, size = 0x20000, scoped, tag = 'output window, operand 0, single buffered']
    %8 = vsyncpa [#allocation4], 0
    %9 = vsyncpa [#allocation7], 0
    %10 = vsyncpa [#allocation5], 0
    // Predicated region
    $region2: #{tpu_custom_call.1} parent=1 // pred_check
      _
    $region3: #{tpu_custom_call.1} parent=1 // pred_check_branch
      %12 = sbr.rel (0) target = $region5
    $region4: #{tpu_custom_call.1} parent=1 // pred_region
      %s14 = ssub.s32 8192, 8192
      %15 = vsyncadd [#allocation4], %s14
      %s16 = sshll.u32 [#allocation3], 4
      %s17 = int_to_ptr.vmem [resolvable:$true] %s16
      %22 = dma.hbm_to_vmem [thread:$0]  %s0, 8192, %s17, [#allocation4], 512, 512, 32
    $region5: #{tpu_custom_call.1} parent=1 // pred_fallthru
      _
    // Predicated region
    $region6: #{tpu_custom_call.1} parent=1 // pred_check
      _
    $region7: #{tpu_custom_call.1} parent=1 // pred_check_branch
      %24 = sbr.rel (0) target = $region9
    $region8: #{tpu_custom_call.1} parent=1 // pred_region
      %s26 = ssub.s32 16384, 16384
      %27 = vsyncadd [#allocation7], %s26
      %s28 = sshll.u32 [#allocation6], 4
      %s29 = int_to_ptr.vmem [resolvable:$true] %s28
      %34 = dma.hbm_to_vmem [thread:$0]  %s1, 16384, %s29, [#allocation7], 256, 256, 16
    $region9: #{tpu_custom_call.1} parent=1 // pred_fallthru
      _
    // Predicated region
    $region10: #{tpu_custom_call.1} parent=1 // pred_check
      _
    $region11: #{tpu_custom_call.1} parent=1 // pred_check_branch
      %36 = sbr.rel (0) target = $region13
    $region12: #{tpu_custom_call.1} parent=1 // pred_region
      _
    $region13: #{tpu_custom_call.1} parent=1 // pred_fallthru
      _
    // Predicated region
    $region14: #{tpu_custom_call.1} parent=1 // pred_check
      _
    $region15: #{tpu_custom_call.1} parent=1 // pred_check_branch
      %38 = sbr.rel (0) target = $region17
    $region16: #{tpu_custom_call.1} parent=1 // pred_region
      %39 = dma.done [#allocation4], 8192
    $region17: #{tpu_custom_call.1} parent=1 // pred_fallthru
      _
    // Predicated region
    $region18: #{tpu_custom_call.1} parent=1 // pred_check
      _
    $region19: #{tpu_custom_call.1} parent=1 // pred_check_branch
      %41 = sbr.rel (0) target = $region21
    $region20: #{tpu_custom_call.1} parent=1 // pred_region
      %42 = dma.done [#allocation7], 16384
    $region21: #{tpu_custom_call.1} parent=1 // pred_fallthru
      _
    %p43 = scmp.eq.s32.totalorder 0, 0
    // Predicated region
    $region22: #{tpu_custom_call.1} parent=1 // pred_check
      %p44 = pneg %p43
    $region23: #{tpu_custom_call.1} parent=1 // pred_check_branch
      %46 = sbr.rel (%p44) target = $region25
    $region24: #{tpu_custom_call.1} parent=1 // pred_region
      %47 = vst [vmem:[#allocation2] sm:$0xff] 0.0
      %48 = vst [vmem:[#allocation2 + $0x8] sm:$0xff] 0.0
      %49 = vst [vmem:[#allocation2 + $0x10] sm:$0xff] 0.0
      %50 = vst [vmem:[#allocation2 + $0x18] sm:$0xff] 0.0
      %51 = vst [vmem:[#allocation2 + $0x20] sm:$0xff] 0.0
      %52 = vst [vmem:[#allocation2 + $0x28] sm:$0xff] 0.0
      %53 = vst [vmem:[#allocation2 + $0x30] sm:$0xff] 0.0
      %54 = vst [vmem:[#allocation2 + $0x38] sm:$0xff] 0.0
      %55 = vst [vmem:[#allocation2 + $0x40] sm:$0xff] 0.0
      %56 = vst [vmem:[#allocation2 + $0x48] sm:$0xff] 0.0
      %57 = vst [vmem:[#allocation2 + $0x50] sm:$0xff] 0.0
      %58 = vst [vmem:[#allocation2 + $0x58] sm:$0xff] 0.0
      %59 = vst [vmem:[#allocation2 + $0x60] sm:$0xff] 0.0
      %60 = vst [vmem:[#allocation2 + $0x68] sm:$0xff] 0.0
      %61 = vst [vmem:[#allocation2 + $0x70] sm:$0xff] 0.0
      %62 = vst [vmem:[#allocation2 + $0x78] sm:$0xff] 0.0
      %63 = vst [vmem:[#allocation2 + $0x80] sm:$0xff] 0.0
      %64 = vst [vmem:[#allocation2 + $0x88] sm:$0xff] 0.0
      %65 = vst [vmem:[#allocation2 + $0x90] sm:$0xff] 0.0
      %66 = vst [vmem:[#allocation2 + $0x98] sm:$0xff] 0.0
      %67 = vst [vmem:[#allocation2 + $0xa0] sm:$0xff] 0.0
      %68 = vst [vmem:[#allocation2 + $0xa8] sm:$0xff] 0.0
      %69 = vst [vmem:[#allocation2 + $0xb0] sm:$0xff] 0.0
      %70 = vst [vmem:[#allocation2 + $0xb8] sm:$0xff] 0.0
      %71 = vst [vmem:[#allocation2 + $0xc0] sm:$0xff] 0.0
      %72 = vst [vmem:[#allocation2 + $0xc8] sm:$0xff] 0.0
      %73 = vst [vmem:[#allocation2 + $0xd0] sm:$0xff] 0.0
      %74 = vst [vmem:[#allocation2 + $0xd8] sm:$0xff] 0.0
      %75 = vst [vmem:[#allocation2 + $0xe0] sm:$0xff] 0.0
      %76 = vst [vmem:[#allocation2 + $0xe8] sm:$0xff] 0.0
      %77 = vst [vmem:[#allocation2 + $0xf0] sm:$0xff] 0.0
      %78 = vst [vmem:[#allocation2 + $0xf8] sm:$0xff] 0.0
    $region25: #{tpu_custom_call.1} parent=1 // pred_fallthru
      _
    %v79 = vld [vmem:[#allocation2] sm:$0xff]
    %v80 = vld [vmem:[#allocation2 + $0x8] sm:$0xff]
    %v81 = vld [vmem:[#allocation2 + $0x10] sm:$0xff]
    %v82 = vld [vmem:[#allocation2 + $0x18] sm:$0xff]
    %v83 = vld [vmem:[#allocation2 + $0x20] sm:$0xff]
    %v84 = vld [vmem:[#allocation2 + $0x28] sm:$0xff]
    %v85 = vld [vmem:[#allocation2 + $0x30] sm:$0xff]
    %v86 = vld [vmem:[#allocation2 + $0x38] sm:$0xff]
    %v87 = vld [vmem:[#allocation2 + $0x40] sm:$0xff]
    %v88 = vld [vmem:[#allocation2 + $0x48] sm:$0xff]
    %v89 = vld [vmem:[#allocation2 + $0x50] sm:$0xff]
    %v90 = vld [vmem:[#allocation2 + $0x58] sm:$0xff]
    %v91 = vld [vmem:[#allocation2 + $0x60] sm:$0xff]
    %v92 = vld [vmem:[#allocation2 + $0x68] sm:$0xff]
    %v93 = vld [vmem:[#allocation2 + $0x70] sm:$0xff]
    %v94 = vld [vmem:[#allocation2 + $0x78] sm:$0xff]
    %v95 = vld [vmem:[#allocation2 + $0x80] sm:$0xff]
    %v96 = vld [vmem:[#allocation2 + $0x88] sm:$0xff]
    %v97 = vld [vmem:[#allocation2 + $0x90] sm:$0xff]
    %v98 = vld [vmem:[#allocation2 + $0x98] sm:$0xff]
    %v99 = vld [vmem:[#allocation2 + $0xa0] sm:$0xff]
    %v100 = vld [vmem:[#allocation2 + $0xa8] sm:$0xff]
    %v101 = vld [vmem:[#allocation2 + $0xb0] sm:$0xff]
    %v102 = vld [vmem:[#allocation2 + $0xb8] sm:$0xff]
    %v103 = vld [vmem:[#allocation2 + $0xc0] sm:$0xff]
    %v104 = vld [vmem:[#allocation2 + $0xc8] sm:$0xff]
    %v105 = vld [vmem:[#allocation2 + $0xd0] sm:$0xff]
    %v106 = vld [vmem:[#allocation2 + $0xd8] sm:$0xff]
    %v107 = vld [vmem:[#allocation2 + $0xe0] sm:$0xff]
    %v108 = vld [vmem:[#allocation2 + $0xe8] sm:$0xff]
    %v109 = vld [vmem:[#allocation2 + $0xf0] sm:$0xff]
    %v110 = vld [vmem:[#allocation2 + $0xf8] sm:$0xff]
    %v111 = vld [vmem:[#allocation3] sm:$0xff]
    %v112 = vld [vmem:[#allocation3 + $0x8] sm:$0xff]
    %v113 = vld [vmem:[#allocation3 + $0x10] sm:$0xff]
    %v114 = vld [vmem:[#allocation3 + $0x18] sm:$0xff]
    %v115 = vld [vmem:[#allocation3 + $0x20] sm:$0xff]
    %v116 = vld [vmem:[#allocation3 + $0x28] sm:$0xff]
    %v117 = vld [vmem:[#allocation3 + $0x30] sm:$0xff]
    %v118 = vld [vmem:[#allocation3 + $0x38] sm:$0xff]
    %v119 = vld [vmem:[#allocation3 + $0x40] sm:$0xff]
    %v120 = vld [vmem:[#allocation3 + $0x48] sm:$0xff]
    %v121 = vld [vmem:[#allocation3 + $0x50] sm:$0xff]
    %v122 = vld [vmem:[#allocation3 + $0x58] sm:$0xff]
    %v123 = vld [vmem:[#allocation3 + $0x60] sm:$0xff]
    %v124 = vld [vmem:[#allocation3 + $0x68] sm:$0xff]
    %v125 = vld [vmem:[#allocation3 + $0x70] sm:$0xff]
    %v126 = vld [vmem:[#allocation3 + $0x78] sm:$0xff]
    %v127 = vld [vmem:[#allocation3 + $0x80] sm:$0xff]
    %v128 = vld [vmem:[#allocation3 + $0x88] sm:$0xff]
    %v129 = vld [vmem:[#allocation3 + $0x90] sm:$0xff]
    %v130 = vld [vmem:[#allocation3 + $0x98] sm:$0xff]
    %v131 = vld [vmem:[#allocation3 + $0xa0] sm:$0xff]
    %v132 = vld [vmem:[#allocation3 + $0xa8] sm:$0xff]
    %v133 = vld [vmem:[#allocation3 + $0xb0] sm:$0xff]
    %v134 = vld [vmem:[#allocation3 + $0xb8] sm:$0xff]
    %v135 = vld [vmem:[#allocation3 + $0xc0] sm:$0xff]
    %v136 = vld [vmem:[#allocation3 + $0xc8] sm:$0xff]
    %v137 = vld [vmem:[#allocation3 + $0xd0] sm:$0xff]
    %v138 = vld [vmem:[#allocation3 + $0xd8] sm:$0xff]
    %v139 = vld [vmem:[#allocation3 + $0xe0] sm:$0xff]
    %v140 = vld [vmem:[#allocation3 + $0xe8] sm:$0xff]
    %v141 = vld [vmem:[#allocation3 + $0xf0] sm:$0xff]
    %v142 = vld [vmem:[#allocation3 + $0xf8] sm:$0xff]
    %v143 = vld [vmem:[#allocation3 + $0x100] sm:$0xff]
    %v144 = vld [vmem:[#allocation3 + $0x108] sm:$0xff]
    %v145 = vld [vmem:[#allocation3 + $0x110] sm:$0xff]
    %v146 = vld [vmem:[#allocation3 + $0x118] sm:$0xff]
    %v147 = vld [vmem:[#allocation3 + $0x120] sm:$0xff]
    %v148 = vld [vmem:[#allocation3 + $0x128] sm:$0xff]
    %v149 = vld [vmem:[#allocation3 + $0x130] sm:$0xff]
    %v150 = vld [vmem:[#allocation3 + $0x138] sm:$0xff]
    %v151 = vld [vmem:[#allocation3 + $0x140] sm:$0xff]
    %v152 = vld [vmem:[#allocation3 + $0x148] sm:$0xff]
    %v153 = vld [vmem:[#allocation3 + $0x150] sm:$0xff]
    %v154 = vld [vmem:[#allocation3 + $0x158] sm:$0xff]
    %v155 = vld [vmem:[#allocation3 + $0x160] sm:$0xff]
    %v156 = vld [vmem:[#allocation3 + $0x168] sm:$0xff]
    %v157 = vld [vmem:[#allocation3 + $0x170] sm:$0xff]
    %v158 = vld [vmem:[#allocation3 + $0x178] sm:$0xff]
    %v159 = vld [vmem:[#allocation3 + $0x180] sm:$0xff]
    %v160 = vld [vmem:[#allocation3 + $0x188] sm:$0xff]
    %v161 = vld [vmem:[#allocation3 + $0x190] sm:$0xff]
    %v162 = vld [vmem:[#allocation3 + $0x198] sm:$0xff]
    %v163 = vld [vmem:[#allocation3 + $0x1a0] sm:$0xff]
    %v164 = vld [vmem:[#allocation3 + $0x1a8] sm:$0xff]
    %v165 = vld [vmem:[#allocation3 + $0x1b0] sm:$0xff]
    %v166 = vld [vmem:[#allocation3 + $0x1b8] sm:$0xff]
    %v167 = vld [vmem:[#allocation3 + $0x1c0] sm:$0xff]
    %v168 = vld [vmem:[#allocation3 + $0x1c8] sm:$0xff]
    %v169 = vld [vmem:[#allocation3 + $0x1d0] sm:$0xff]
    %v170 = vld [vmem:[#allocation3 + $0x1d8] sm:$0xff]
    %v171 = vld [vmem:[#allocation3 + $0x1e0] sm:$0xff]
    %v172 = vld [vmem:[#allocation3 + $0x1e8] sm:$0xff]
    %v173 = vld [vmem:[#allocation3 + $0x1f0] sm:$0xff]
    %v174 = vld [vmem:[#allocation3 + $0x1f8] sm:$0xff]
    %v175 = vld [vmem:[#allocation6] sm:$0xff]
    %v176 = vld [vmem:[#allocation6 + $0x8] sm:$0xff]
    %v177 = vld [vmem:[#allocation6 + $0x10] sm:$0xff]
    %v178 = vld [vmem:[#allocation6 + $0x18] sm:$0xff]
    %v179 = vld [vmem:[#allocation6 + $0x20] sm:$0xff]
    %v180 = vld [vmem:[#allocation6 + $0x28] sm:$0xff]
    %v181 = vld [vmem:[#allocation6 + $0x30] sm:$0xff]
    %v182 = vld [vmem:[#allocation6 + $0x38] sm:$0xff]
    %v183 = vld [vmem:[#allocation6 + $0x40] sm:$0xff]
    %v184 = vld [vmem:[#allocation6 + $0x48] sm:$0xff]
    %v185 = vld [vmem:[#allocation6 + $0x50] sm:$0xff]
    %v186 = vld [vmem:[#allocation6 + $0x58] sm:$0xff]
    %v187 = vld [vmem:[#allocation6 + $0x60] sm:$0xff]
    %v188 = vld [vmem:[#allocation6 + $0x68] sm:$0xff]
    %v189 = vld [vmem:[#allocation6 + $0x70] sm:$0xff]
    %v190 = vld [vmem:[#allocation6 + $0x78] sm:$0xff]
    %v191 = vld [vmem:[#allocation6 + $0x80] sm:$0xff]
    %v192 = vld [vmem:[#allocation6 + $0x88] sm:$0xff]
    %v193 = vld [vmem:[#allocation6 + $0x90] sm:$0xff]
    %v194 = vld [vmem:[#allocation6 + $0x98] sm:$0xff]
    %v195 = vld [vmem:[#allocation6 + $0xa0] sm:$0xff]
    %v196 = vld [vmem:[#allocation6 + $0xa8] sm:$0xff]
    %v197 = vld [vmem:[#allocation6 + $0xb0] sm:$0xff]
    %v198 = vld [vmem:[#allocation6 + $0xb8] sm:$0xff]
    %v199 = vld [vmem:[#allocation6 + $0xc0] sm:$0xff]
    %v200 = vld [vmem:[#allocation6 + $0xc8] sm:$0xff]
    %v201 = vld [vmem:[#allocation6 + $0xd0] sm:$0xff]
    %v202 = vld [vmem:[#allocation6 + $0xd8] sm:$0xff]
    %v203 = vld [vmem:[#allocation6 + $0xe0] sm:$0xff]
    %v204 = vld [vmem:[#allocation6 + $0xe8] sm:$0xff]
    %v205 = vld [vmem:[#allocation6 + $0xf0] sm:$0xff]
    %v206 = vld [vmem:[#allocation6 + $0xf8] sm:$0xff]
    %v207 = vld [vmem:[#allocation6 + $0x100] sm:$0xff]
    %v208 = vld [vmem:[#allocation6 + $0x108] sm:$0xff]
    %v209 = vld [vmem:[#allocation6 + $0x110] sm:$0xff]
    %v210 = vld [vmem:[#allocation6 + $0x118] sm:$0xff]
    %v211 = vld [vmem:[#allocation6 + $0x120] sm:$0xff]
    %v212 = vld [vmem:[#allocation6 + $0x128] sm:$0xff]
    %v213 = vld [vmem:[#allocation6 + $0x130] sm:$0xff]
    %v214 = vld [vmem:[#allocation6 + $0x138] sm:$0xff]
    %v215 = vld [vmem:[#allocation6 + $0x140] sm:$0xff]
    %v216 = vld [vmem:[#allocation6 + $0x148] sm:$0xff]
    %v217 = vld [vmem:[#allocation6 + $0x150] sm:$0xff]
    %v218 = vld [vmem:[#allocation6 + $0x158] sm:$0xff]
    %v219 = vld [vmem:[#allocation6 + $0x160] sm:$0xff]
    %v220 = vld [vmem:[#allocation6 + $0x168] sm:$0xff]
    %v221 = vld [vmem:[#allocation6 + $0x170] sm:$0xff]
    %v222 = vld [vmem:[#allocation6 + $0x178] sm:$0xff]
    %v223 = vld [vmem:[#allocation6 + $0x180] sm:$0xff]
    %v224 = vld [vmem:[#allocation6 + $0x188] sm:$0xff]
    %v225 = vld [vmem:[#allocation6 + $0x190] sm:$0xff]
    %v226 = vld [vmem:[#allocation6 + $0x198] sm:$0xff]
    %v227 = vld [vmem:[#allocation6 + $0x1a0] sm:$0xff]
    %v228 = vld [vmem:[#allocation6 + $0x1a8] sm:$0xff]
    %v229 = vld [vmem:[#allocation6 + $0x1b0] sm:$0xff]
    %v230 = vld [vmem:[#allocation6 + $0x1b8] sm:$0xff]
    %v231 = vld [vmem:[#allocation6 + $0x1c0] sm:$0xff]
    %v232 = vld [vmem:[#allocation6 + $0x1c8] sm:$0xff]
    %v233 = vld [vmem:[#allocation6 + $0x1d0] sm:$0xff]
    %v234 = vld [vmem:[#allocation6 + $0x1d8] sm:$0xff]
    %v235 = vld [vmem:[#allocation6 + $0x1e0] sm:$0xff]
    %v236 = vld [vmem:[#allocation6 + $0x1e8] sm:$0xff]
    %v237 = vld [vmem:[#allocation6 + $0x1f0] sm:$0xff]
    %v238 = vld [vmem:[#allocation6 + $0x1f8] sm:$0xff]
    %v239 = vld [vmem:[#allocation6 + $0x200] sm:$0xff]
    %v240 = vld [vmem:[#allocation6 + $0x208] sm:$0xff]
    %v241 = vld [vmem:[#allocation6 + $0x210] sm:$0xff]
    %v242 = vld [vmem:[#allocation6 + $0x218] sm:$0xff]
    %v243 = vld [vmem:[#allocation6 + $0x220] sm:$0xff]
    %v244 = vld [vmem:[#allocation6 + $0x228] sm:$0xff]
    %v245 = vld [vmem:[#allocation6 + $0x230] sm:$0xff]
    %v246 = vld [vmem:[#allocation6 + $0x238] sm:$0xff]
    %v247 = vld [vmem:[#allocation6 + $0x240] sm:$0xff]
    %v248 = vld [vmem:[#allocation6 + $0x248] sm:$0xff]
    %v249 = vld [vmem:[#allocation6 + $0x250] sm:$0xff]
    %v250 = vld [vmem:[#allocation6 + $0x258] sm:$0xff]
    %v251 = vld [vmem:[#allocation6 + $0x260] sm:$0xff]
    %v252 = vld [vmem:[#allocation6 + $0x268] sm:$0xff]
    %v253 = vld [vmem:[#allocation6 + $0x270] sm:$0xff]
    %v254 = vld [vmem:[#allocation6 + $0x278] sm:$0xff]
    %v255 = vld [vmem:[#allocation6 + $0x280] sm:$0xff]
    %v256 = vld [vmem:[#allocation6 + $0x288] sm:$0xff]
    %v257 = vld [vmem:[#allocation6 + $0x290] sm:$0xff]
    %v258 = vld [vmem:[#allocation6 + $0x298] sm:$0xff]
    %v259 = vld [vmem:[#allocation6 + $0x2a0] sm:$0xff]
    %v260 = vld [vmem:[#allocation6 + $0x2a8] sm:$0xff]
    %v261 = vld [vmem:[#allocation6 + $0x2b0] sm:$0xff]
    %v262 = vld [vmem:[#allocation6 + $0x2b8] sm:$0xff]
    %v263 = vld [vmem:[#allocation6 + $0x2c0] sm:$0xff]
    %v264 = vld [vmem:[#allocation6 + $0x2c8] sm:$0xff]
    %v265 = vld [vmem:[#allocation6 + $0x2d0] sm:$0xff]
    %v266 = vld [vmem:[#allocation6 + $0x2d8] sm:$0xff]
    %v267 = vld [vmem:[#allocation6 + $0x2e0] sm:$0xff]
    %v268 = vld [vmem:[#allocation6 + $0x2e8] sm:$0xff]
    %v269 = vld [vmem:[#allocation6 + $0x2f0] sm:$0xff]
    %v270 = vld [vmem:[#allocation6 + $0x2f8] sm:$0xff]
    %v271 = vld [vmem:[#allocation6 + $0x300] sm:$0xff]
    %v272 = vld [vmem:[#allocation6 + $0x308] sm:$0xff]
    %v273 = vld [vmem:[#allocation6 + $0x310] sm:$0xff]
    %v274 = vld [vmem:[#allocation6 + $0x318] sm:$0xff]
    %v275 = vld [vmem:[#allocation6 + $0x320] sm:$0xff]
    %v276 = vld [vmem:[#allocation6 + $0x328] sm:$0xff]
    %v277 = vld [vmem:[#allocation6 + $0x330] sm:$0xff]
    %v278 = vld [vmem:[#allocation6 + $0x338] sm:$0xff]
    %v279 = vld [vmem:[#allocation6 + $0x340] sm:$0xff]
    %v280 = vld [vmem:[#allocation6 + $0x348] sm:$0xff]
    %v281 = vld [vmem:[#allocation6 + $0x350] sm:$0xff]
    %v282 = vld [vmem:[#allocation6 + $0x358] sm:$0xff]
    %v283 = vld [vmem:[#allocation6 + $0x360] sm:$0xff]
    %v284 = vld [vmem:[#allocation6 + $0x368] sm:$0xff]
    %v285 = vld [vmem:[#allocation6 + $0x370] sm:$0xff]
    %v286 = vld [vmem:[#allocation6 + $0x378] sm:$0xff]
    %v287 = vld [vmem:[#allocation6 + $0x380] sm:$0xff]
    %v288 = vld [vmem:[#allocation6 + $0x388] sm:$0xff]
    %v289 = vld [vmem:[#allocation6 + $0x390] sm:$0xff]
    %v290 = vld [vmem:[#allocation6 + $0x398] sm:$0xff]
    %v291 = vld [vmem:[#allocation6 + $0x3a0] sm:$0xff]
    %v292 = vld [vmem:[#allocation6 + $0x3a8] sm:$0xff]
    %v293 = vld [vmem:[#allocation6 + $0x3b0] sm:$0xff]
    %v294 = vld [vmem:[#allocation6 + $0x3b8] sm:$0xff]
    %v295 = vld [vmem:[#allocation6 + $0x3c0] sm:$0xff]
    %v296 = vld [vmem:[#allocation6 + $0x3c8] sm:$0xff]
    %v297 = vld [vmem:[#allocation6 + $0x3d0] sm:$0xff]
    %v298 = vld [vmem:[#allocation6 + $0x3d8] sm:$0xff]
    %v299 = vld [vmem:[#allocation6 + $0x3e0] sm:$0xff]
    %v300 = vld [vmem:[#allocation6 + $0x3e8] sm:$0xff]
    %v301 = vld [vmem:[#allocation6 + $0x3f0] sm:$0xff]
    %v302 = vld [vmem:[#allocation6 + $0x3f8] sm:$0xff]
    %303 = vmatprep.subr.mxu0 %v176
    %304 = vmatpush1.msra.mxu0 %v175
    %305 = vmatprep.subr.mxu0 %v178
    %306 = vmatpush1.msra.mxu0 %v177
    %307 = vmatprep.subr.mxu0 %v180
    %308 = vmatpush1.msra.mxu0 %v179
    %309 = vmatprep.subr.mxu0 %v182
    %310 = vmatpush1.msra.mxu0 %v181
    %311 = vmatprep.subr.mxu0 %v184
    %312 = vmatpush1.msra.mxu0 %v183
    %313 = vmatprep.subr.mxu0 %v186
    %314 = vmatpush1.msra.mxu0 %v185
    %315 = vmatprep.subr.mxu0 %v188
    %316 = vmatpush1.msra.mxu0 %v187
    %317 = vmatprep.subr.mxu0 %v190
    %318 = vmatpush1.msra.mxu0 %v189
    %319 = vmatprep.subr.mxu0 %v192
    %320 = vmatpush1.msra.mxu0 %v191
    %321 = vmatprep.subr.mxu0 %v194
    %322 = vmatpush1.msra.mxu0 %v193
    %323 = vmatprep.subr.mxu0 %v196
    %324 = vmatpush1.msra.mxu0 %v195
    %325 = vmatprep.subr.mxu0 %v198
    %326 = vmatpush1.msra.mxu0 %v197
    %327 = vmatprep.subr.mxu0 %v200
    %328 = vmatpush1.msra.mxu0 %v199
    %329 = vmatprep.subr.mxu0 %v202
    %330 = vmatpush1.msra.mxu0 %v201
    %331 = vmatprep.subr.mxu0 %v204
    %332 = vmatpush1.msra.mxu0 %v203
    %333 = vmatprep.subr.mxu0 %v206
    %334 = vmatpush1.msra.mxu0 %v205
    %335 = vmatprep.subr.mxu0 %v208
    %336 = vmatpush1.msra.mxu0 %v207
    %337 = vmatprep.subr.mxu0 %v210
    %338 = vmatpush1.msra.mxu0 %v209
    %339 = vmatprep.subr.mxu0 %v212
    %340 = vmatpush1.msra.mxu0 %v211
    %341 = vmatprep.subr.mxu0 %v214
    %342 = vmatpush1.msra.mxu0 %v213
    %343 = vmatprep.subr.mxu0 %v216
    %344 = vmatpush1.msra.mxu0 %v215
    %345 = vmatprep.subr.mxu0 %v218
    %346 = vmatpush1.msra.mxu0 %v217
    %347 = vmatprep.subr.mxu0 %v220
    %348 = vmatpush1.msra.mxu0 %v219
    %349 = vmatprep.subr.mxu0 %v222
    %350 = vmatpush1.msra.mxu0 %v221
    %351 = vmatprep.subr.mxu0 %v224
    %352 = vmatpush1.msra.mxu0 %v223
    %353 = vmatprep.subr.mxu0 %v226
    %354 = vmatpush1.msra.mxu0 %v225
    %355 = vmatprep.subr.mxu0 %v228
    %356 = vmatpush1.msra.mxu0 %v227
    %357 = vmatprep.subr.mxu0 %v230
    %358 = vmatpush1.msra.mxu0 %v229
    %359 = vmatprep.subr.mxu0 %v232
    %360 = vmatpush1.msra.mxu0 %v231
    %361 = vmatprep.subr.mxu0 %v234
    %362 = vmatpush1.msra.mxu0 %v233
    %363 = vmatprep.subr.mxu0 %v236
    %364 = vmatpush1.msra.mxu0 %v235
    %365 = vmatprep.subr.mxu0 %v238
    %366 = vmatpush1.msra.mxu0 %v237
    %367 = vmatprep.mubr.f32.mxu0 %v112
    %368 = vmatmul.mubr.f32.gmra.mrb[0].mxu0 %v111
    %v369 = vpop.f32.mrb[0].mxu0
    %v370 = vadd.f32 0.0, %v369
    %v371 = vpop.f32.mrb[0].mxu0
    %v372 = vadd.f32 0.0, %v371
    %373 = vmatprep.mubr.f32.mxu0 %v116
    %374 = vmatmul.mubr.f32.gmra.mrb[0].mxu0 %v115
    %v375 = vpop.f32.mrb[0].mxu0
    %v376 = vadd.f32 0.0, %v375
    %v377 = vpop.f32.mrb[0].mxu0
    %v378 = vadd.f32 0.0, %v377
    %379 = vmatprep.mubr.f32.mxu0 %v120
    %380 = vmatmul.mubr.f32.gmra.mrb[0].mxu0 %v119
    %v381 = vpop.f32.mrb[0].mxu0
    %v382 = vadd.f32 0.0, %v381
    %v383 = vpop.f32.mrb[0].mxu0
    %v384 = vadd.f32 0.0, %v383
    %385 = vmatprep.mubr.f32.mxu0 %v124
    %386 = vmatmul.mubr.f32.gmra.mrb[0].mxu0 %v123
    %v387 = vpop.f32.mrb[0].mxu0
    %v388 = vadd.f32 0.0, %v387
    %v389 = vpop.f32.mrb[0].mxu0
    %v390 = vadd.f32 0.0, %v389
    %391 = vmatprep.mubr.f32.mxu0 %v128
    %392 = vmatmul.mubr.f32.gmra.mrb[0].mxu0 %v127
    %v393 = vpop.f32.mrb[0].mxu0
    %v394 = vadd.f32 0.0, %v393
    %v395 = vpop.f32.mrb[0].mxu0
    %v396 = vadd.f32 0.0, %v395
    %397 = vmatprep.mubr.f32.mxu0 %v132
    %398 = vmatmul.mubr.f32.gmra.mrb[0].mxu0 %v131
    %v399 = vpop.f32.mrb[0].mxu0
    %v400 = vadd.f32 0.0, %v399
    %v401 = vpop.f32.mrb[0].mxu0
    %v402 = vadd.f32 0.0, %v401
    %403 = vmatprep.mubr.f32.mxu0 %v136
    %404 = vmatmul.mubr.f32.gmra.mrb[0].mxu0 %v135
    %v405 = vpop.f32.mrb[0].mxu0
    %v406 = vadd.f32 0.0, %v405
    %v407 = vpop.f32.mrb[0].mxu0
    %v408 = vadd.f32 0.0, %v407
    %409 = vmatprep.mubr.f32.mxu0 %v140
    %410 = vmatmul.mubr.f32.gmra.mrb[0].mxu0 %v139
    %v411 = vpop.f32.mrb[0].mxu0
    %v412 = vadd.f32 0.0, %v411
    %v413 = vpop.f32.mrb[0].mxu0
    %v414 = vadd.f32 0.0, %v413
    %415 = vmatprep.mubr.f32.mxu0 %v144
    %416 = vmatmul.mubr.f32.gmra.mrb[0].mxu0 %v143
    %v417 = vpop.f32.mrb[0].mxu0
    %v418 = vadd.f32 0.0, %v417
    %v419 = vpop.f32.mrb[0].mxu0
    %v420 = vadd.f32 0.0, %v419
    %421 = vmatprep.mubr.f32.mxu0 %v148
    %422 = vmatmul.mubr.f32.gmra.mrb[0].mxu0 %v147
    %v423 = vpop.f32.mrb[0].mxu0
    %v424 = vadd.f32 0.0, %v423
    %v425 = vpop.f32.mrb[0].mxu0
    %v426 = vadd.f32 0.0, %v425
    %427 = vmatprep.mubr.f32.mxu0 %v152
    %428 = vmatmul.mubr.f32.gmra.mrb[0].mxu0 %v151
    %v429 = vpop.f32.mrb[0].mxu0
    %v430 = vadd.f32 0.0, %v429
    %v431 = vpop.f32.mrb[0].mxu0
    %v432 = vadd.f32 0.0, %v431
    %433 = vmatprep.mubr.f32.mxu0 %v156
    %434 = vmatmul.mubr.f32.gmra.mrb[0].mxu0 %v155
    %v435 = vpop.f32.mrb[0].mxu0
    %v436 = vadd.f32 0.0, %v435
    %v437 = vpop.f32.mrb[0].mxu0
    %v438 = vadd.f32 0.0, %v437
    %439 = vmatprep.mubr.f32.mxu0 %v160
    %440 = vmatmul.mubr.f32.gmra.mrb[0].mxu0 %v159
    %v441 = vpop.f32.mrb[0].mxu0
    %v442 = vadd.f32 0.0, %v441
    %v443 = vpop.f32.mrb[0].mxu0
    %v444 = vadd.f32 0.0, %v443
    %445 = vmatprep.mubr.f32.mxu0 %v164
    %446 = vmatmul.mubr.f32.gmra.mrb[0].mxu0 %v163
    %v447 = vpop.f32.mrb[0].mxu0
    %v448 = vadd.f32 0.0, %v447
    %v449 = vpop.f32.mrb[0].mxu0
    %v450 = vadd.f32 0.0, %v449
    %451 = vmatprep.mubr.f32.mxu0 %v168
    %452 = vmatmul.mubr.f32.gmra.mrb[0].mxu0 %v167
    %v453 = vpop.f32.mrb[0].mxu0
    %v454 = vadd.f32 0.0, %v453
    %v455 = vpop.f32.mrb[0].mxu0
    %v456 = vadd.f32 0.0, %v455
    %457 = vmatprep.mubr.f32.mxu0 %v172
    %458 = vmatmul.mubr.f32.gmra.mrb[0].mxu0 %v171
    %v459 = vpop.f32.mrb[0].mxu0
    %v460 = vadd.f32 0.0, %v459
    %v461 = vpop.f32.mrb[0].mxu0
    %v462 = vadd.f32 0.0, %v461
    %463 = vdwg.mxu0
    %464 = vmatprep.subr.mxu0 %v240
    %465 = vmatpush1.msra.mxu0 %v239
    %466 = vmatprep.subr.mxu0 %v242
    %467 = vmatpush1.msra.mxu0 %v241
    %468 = vmatprep.subr.mxu0 %v244
    %469 = vmatpush1.msra.mxu0 %v243
    %470 = vmatprep.subr.mxu0 %v246
    %471 = vmatpush1.msra.mxu0 %v245
    %472 = vmatprep.subr.mxu0 %v248
    %473 = vmatpush1.msra.mxu0 %v247
    %474 = vmatprep.subr.mxu0 %v250
    %475 = vmatpush1.msra.mxu0 %v249
    %476 = vmatprep.subr.mxu0 %v252
    %477 = vmatpush1.msra.mxu0 %v251
    %478 = vmatprep.subr.mxu0 %v254
    %479 = vmatpush1.msra.mxu0 %v253
    %480 = vmatprep.subr.mxu0 %v256
    %481 = vmatpush1.msra.mxu0 %v255
    %482 = vmatprep.subr.mxu0 %v258
    %483 = vmatpush1.msra.mxu0 %v257
    %484 = vmatprep.subr.mxu0 %v260
    %485 = vmatpush1.msra.mxu0 %v259
    %486 = vmatprep.subr.mxu0 %v262
    %487 = vmatpush1.msra.mxu0 %v261
    %488 = vmatprep.subr.mxu0 %v264
    %489 = vmatpush1.msra.mxu0 %v263
    %490 = vmatprep.subr.mxu0 %v266
    %491 = vmatpush1.msra.mxu0 %v265
    %492 = vmatprep.subr.mxu0 %v268
    %493 = vmatpush1.msra.mxu0 %v267
    %494 = vmatprep.subr.mxu0 %v270
    %495 = vmatpush1.msra.mxu0 %v269
    %496 = vmatprep.subr.mxu0 %v272
    %497 = vmatpush1.msra.mxu0 %v271
    %498 = vmatprep.subr.mxu0 %v274
    %499 = vmatpush1.msra.mxu0 %v273
    %500 = vmatprep.subr.mxu0 %v276
    %501 = vmatpush1.msra.mxu0 %v275
    %502 = vmatprep.subr.mxu0 %v278
    %503 = vmatpush1.msra.mxu0 %v277
    %504 = vmatprep.subr.mxu0 %v280
    %505 = vmatpush1.msra.mxu0 %v279
    %506 = vmatprep.subr.mxu0 %v282
    %507 = vmatpush1.msra.mxu0 %v281
    %508 = vmatprep.subr.mxu0 %v284
    %509 = vmatpush1.msra.mxu0 %v283
    %510 = vmatprep.subr.mxu0 %v286
    %511 = vmatpush1.msra.mxu0 %v285
    %512 = vmatprep.subr.mxu0 %v288
    %513 = vmatpush1.msra.mxu0 %v287
    %514 = vmatprep.subr.mxu0 %v290
    %515 = vmatpush1.msra.mxu0 %v289
    %516 = vmatprep.subr.mxu0 %v292
    %517 = vmatpush1.msra.mxu0 %v291
    %518 = vmatprep.subr.mxu0 %v294
    %519 = vmatpush1.msra.mxu0 %v293
    %520 = vmatprep.subr.mxu0 %v296
    %521 = vmatpush1.msra.mxu0 %v295
    %522 = vmatprep.subr.mxu0 %v298
    %523 = vmatpush1.msra.mxu0 %v297
    %524 = vmatprep.subr.mxu0 %v300
    %525 = vmatpush1.msra.mxu0 %v299
    %526 = vmatprep.subr.mxu0 %v302
    %527 = vmatpush1.msra.mxu0 %v301
    %528 = vmatprep.mubr.f32.mxu0 %v114
    %529 = vmatmul.mubr.f32.gmra.mrb[0].mxu0 %v113
    %v530 = vpop.f32.mrb[0].mxu0
    %v531 = vadd.f32 %v370, %v530
    %v532 = vpop.f32.mrb[0].mxu0
    %v533 = vadd.f32 %v372, %v532
    %534 = vmatprep.mubr.f32.mxu0 %v118
    %535 = vmatmul.mubr.f32.gmra.mrb[0].mxu0 %v117
    %v536 = vpop.f32.mrb[0].mxu0
    %v537 = vadd.f32 %v376, %v536
    %v538 = vpop.f32.mrb[0].mxu0
    %v539 = vadd.f32 %v378, %v538
    %540 = vmatprep.mubr.f32.mxu0 %v122
    %541 = vmatmul.mubr.f32.gmra.mrb[0].mxu0 %v121
    %v542 = vpop.f32.mrb[0].mxu0
    %v543 = vadd.f32 %v382, %v542
    %v544 = vpop.f32.mrb[0].mxu0
    %v545 = vadd.f32 %v384, %v544
    %546 = vmatprep.mubr.f32.mxu0 %v126
    %547 = vmatmul.mubr.f32.gmra.mrb[0].mxu0 %v125
    %v548 = vpop.f32.mrb[0].mxu0
    %v549 = vadd.f32 %v388, %v548
    %v550 = vpop.f32.mrb[0].mxu0
    %v551 = vadd.f32 %v390, %v550
    %552 = vmatprep.mubr.f32.mxu0 %v130
    %553 = vmatmul.mubr.f32.gmra.mrb[0].mxu0 %v129
    %v554 = vpop.f32.mrb[0].mxu0
    %v555 = vadd.f32 %v394, %v554
    %v556 = vpop.f32.mrb[0].mxu0
    %v557 = vadd.f32 %v396, %v556
    %558 = vmatprep.mubr.f32.mxu0 %v134
    %559 = vmatmul.mubr.f32.gmra.mrb[0].mxu0 %v133
    %v560 = vpop.f32.mrb[0].mxu0
    %v561 = vadd.f32 %v400, %v560
    %v562 = vpop.f32.mrb[0].mxu0
    %v563 = vadd.f32 %v402, %v562
    %564 = vmatprep.mubr.f32.mxu0 %v138
    %565 = vmatmul.mubr.f32.gmra.mrb[0].mxu0 %v137
    %v566 = vpop.f32.mrb[0].mxu0
    %v567 = vadd.f32 %v406, %v566
    %v568 = vpop.f32.mrb[0].mxu0
    %v569 = vadd.f32 %v408, %v568
    %570 = vmatprep.mubr.f32.mxu0 %v142
    %571 = vmatmul.mubr.f32.gmra.mrb[0].mxu0 %v141
    %v572 = vpop.f32.mrb[0].mxu0
    %v573 = vadd.f32 %v412, %v572
    %v574 = vpop.f32.mrb[0].mxu0
    %v575 = vadd.f32 %v414, %v574
    %576 = vmatprep.mubr.f32.mxu0 %v146
    %577 = vmatmul.mubr.f32.gmra.mrb[0].mxu0 %v145
    %v578 = vpop.f32.mrb[0].mxu0
    %v579 = vadd.f32 %v418, %v578
    %v580 = vpop.f32.mrb[0].mxu0
    %v581 = vadd.f32 %v420, %v580
    %582 = vmatprep.mubr.f32.mxu0 %v150
    %583 = vmatmul.mubr.f32.gmra.mrb[0].mxu0 %v149
    %v584 = vpop.f32.mrb[0].mxu0
    %v585 = vadd.f32 %v424, %v584
    %v586 = vpop.f32.mrb[0].mxu0
    %v587 = vadd.f32 %v426, %v586
    %588 = vmatprep.mubr.f32.mxu0 %v154
    %589 = vmatmul.mubr.f32.gmra.mrb[0].mxu0 %v153
    %v590 = vpop.f32.mrb[0].mxu0
    %v591 = vadd.f32 %v430, %v590
    %v592 = vpop.f32.mrb[0].mxu0
    %v593 = vadd.f32 %v432, %v592
    %594 = vmatprep.mubr.f32.mxu0 %v158
    %595 = vmatmul.mubr.f32.gmra.mrb[0].mxu0 %v157
    %v596 = vpop.f32.mrb[0].mxu0
    %v597 = vadd.f32 %v436, %v596
    %v598 = vpop.f32.mrb[0].mxu0
    %v599 = vadd.f32 %v438, %v598
    %600 = vmatprep.mubr.f32.mxu0 %v162
    %601 = vmatmul.mubr.f32.gmra.mrb[0].mxu0 %v161
    %v602 = vpop.f32.mrb[0].mxu0
    %v603 = vadd.f32 %v442, %v602
    %v604 = vpop.f32.mrb[0].mxu0
    %v605 = vadd.f32 %v444, %v604
    %606 = vmatprep.mubr.f32.mxu0 %v166
    %607 = vmatmul.mubr.f32.gmra.mrb[0].mxu0 %v165
    %v608 = vpop.f32.mrb[0].mxu0
    %v609 = vadd.f32 %v448, %v608
    %v610 = vpop.f32.mrb[0].mxu0
    %v611 = vadd.f32 %v450, %v610
    %612 = vmatprep.mubr.f32.mxu0 %v170
    %613 = vmatmul.mubr.f32.gmra.mrb[0].mxu0 %v169
    %v614 = vpop.f32.mrb[0].mxu0
    %v615 = vadd.f32 %v454, %v614
    %v616 = vpop.f32.mrb[0].mxu0
    %v617 = vadd.f32 %v456, %v616
    %618 = vmatprep.mubr.f32.mxu0 %v174
    %619 = vmatmul.mubr.f32.gmra.mrb[0].mxu0 %v173
    %v620 = vpop.f32.mrb[0].mxu0
    %v621 = vadd.f32 %v460, %v620
    %v622 = vpop.f32.mrb[0].mxu0
    %v623 = vadd.f32 %v462, %v622
    %624 = vdwg.mxu0
    %v625 = vadd.f32 %v79, %v531
    %v626 = vadd.f32 %v80, %v533
    %v627 = vadd.f32 %v81, %v537
    %v628 = vadd.f32 %v82, %v539
    %v629 = vadd.f32 %v83, %v543
    %v630 = vadd.f32 %v84, %v545
    %v631 = vadd.f32 %v85, %v549
    %v632 = vadd.f32 %v86, %v551
    %v633 = vadd.f32 %v87, %v555
    %v634 = vadd.f32 %v88, %v557
    %v635 = vadd.f32 %v89, %v561
    %v636 = vadd.f32 %v90, %v563
    %v637 = vadd.f32 %v91, %v567
    %v638 = vadd.f32 %v92, %v569
    %v639 = vadd.f32 %v93, %v573
    %v640 = vadd.f32 %v94, %v575
    %v641 = vadd.f32 %v95, %v579
    %v642 = vadd.f32 %v96, %v581
    %v643 = vadd.f32 %v97, %v585
    %v644 = vadd.f32 %v98, %v587
    %v645 = vadd.f32 %v99, %v591
    %v646 = vadd.f32 %v100, %v593
    %v647 = vadd.f32 %v101, %v597
    %v648 = vadd.f32 %v102, %v599
    %v649 = vadd.f32 %v103, %v603
    %v650 = vadd.f32 %v104, %v605
    %v651 = vadd.f32 %v105, %v609
    %v652 = vadd.f32 %v106, %v611
    %v653 = vadd.f32 %v107, %v615
    %v654 = vadd.f32 %v108, %v617
    %v655 = vadd.f32 %v109, %v621
    %v656 = vadd.f32 %v110, %v623
    %657 = vst [vmem:[#allocation2] sm:$0xff] %v625
    %658 = vst [vmem:[#allocation2 + $0x8] sm:$0xff] %v626
    %659 = vst [vmem:[#allocation2 + $0x10] sm:$0xff] %v627
    %660 = vst [vmem:[#allocation2 + $0x18] sm:$0xff] %v628
    %661 = vst [vmem:[#allocation2 + $0x20] sm:$0xff] %v629
    %662 = vst [vmem:[#allocation2 + $0x28] sm:$0xff] %v630
    %663 = vst [vmem:[#allocation2 + $0x30] sm:$0xff] %v631
    %664 = vst [vmem:[#allocation2 + $0x38] sm:$0xff] %v632
    %665 = vst [vmem:[#allocation2 + $0x40] sm:$0xff] %v633
    %666 = vst [vmem:[#allocation2 + $0x48] sm:$0xff] %v634
    %667 = vst [vmem:[#allocation2 + $0x50] sm:$0xff] %v635
    %668 = vst [vmem:[#allocation2 + $0x58] sm:$0xff] %v636
    %669 = vst [vmem:[#allocation2 + $0x60] sm:$0xff] %v637
    %670 = vst [vmem:[#allocation2 + $0x68] sm:$0xff] %v638
    %671 = vst [vmem:[#allocation2 + $0x70] sm:$0xff] %v639
    %672 = vst [vmem:[#allocation2 + $0x78] sm:$0xff] %v640
    %673 = vst [vmem:[#allocation2 + $0x80] sm:$0xff] %v641
    %674 = vst [vmem:[#allocation2 + $0x88] sm:$0xff] %v642
    %675 = vst [vmem:[#allocation2 + $0x90] sm:$0xff] %v643
    %676 = vst [vmem:[#allocation2 + $0x98] sm:$0xff] %v644
    %677 = vst [vmem:[#allocation2 + $0xa0] sm:$0xff] %v645
    %678 = vst [vmem:[#allocation2 + $0xa8] sm:$0xff] %v646
    %679 = vst [vmem:[#allocation2 + $0xb0] sm:$0xff] %v647
    %680 = vst [vmem:[#allocation2 + $0xb8] sm:$0xff] %v648
    %681 = vst [vmem:[#allocation2 + $0xc0] sm:$0xff] %v649
    %682 = vst [vmem:[#allocation2 + $0xc8] sm:$0xff] %v650
    %683 = vst [vmem:[#allocation2 + $0xd0] sm:$0xff] %v651
    %684 = vst [vmem:[#allocation2 + $0xd8] sm:$0xff] %v652
    %685 = vst [vmem:[#allocation2 + $0xe0] sm:$0xff] %v653
    %686 = vst [vmem:[#allocation2 + $0xe8] sm:$0xff] %v654
    %687 = vst [vmem:[#allocation2 + $0xf0] sm:$0xff] %v655
    %688 = vst [vmem:[#allocation2 + $0xf8] sm:$0xff] %v656
    // Predicated region
    $region26: #{tpu_custom_call.1} parent=1 // pred_check
      %p689 = pneg %p43
    $region27: #{tpu_custom_call.1} parent=1 // pred_check_branch
      %691 = sbr.rel (%p689) target = $region29
    $region28: #{tpu_custom_call.1} parent=1 // pred_region
      %v692 = vld [vmem:[#allocation2] sm:$0xff]
      %v693 = vld [vmem:[#allocation2 + $0x8] sm:$0xff]
      %v694 = vld [vmem:[#allocation2 + $0x10] sm:$0xff]
      %v695 = vld [vmem:[#allocation2 + $0x18] sm:$0xff]
      %v696 = vld [vmem:[#allocation2 + $0x20] sm:$0xff]
      %v697 = vld [vmem:[#allocation2 + $0x28] sm:$0xff]
      %v698 = vld [vmem:[#allocation2 + $0x30] sm:$0xff]
      %v699 = vld [vmem:[#allocation2 + $0x38] sm:$0xff]
      %v700 = vld [vmem:[#allocation2 + $0x40] sm:$0xff]
      %v701 = vld [vmem:[#allocation2 + $0x48] sm:$0xff]
      %v702 = vld [vmem:[#allocation2 + $0x50] sm:$0xff]
      %v703 = vld [vmem:[#allocation2 + $0x58] sm:$0xff]
      %v704 = vld [vmem:[#allocation2 + $0x60] sm:$0xff]
      %v705 = vld [vmem:[#allocation2 + $0x68] sm:$0xff]
      %v706 = vld [vmem:[#allocation2 + $0x70] sm:$0xff]
      %v707 = vld [vmem:[#allocation2 + $0x78] sm:$0xff]
      %v708 = vld [vmem:[#allocation2 + $0x80] sm:$0xff]
      %v709 = vld [vmem:[#allocation2 + $0x88] sm:$0xff]
      %v710 = vld [vmem:[#allocation2 + $0x90] sm:$0xff]
      %v711 = vld [vmem:[#allocation2 + $0x98] sm:$0xff]
      %v712 = vld [vmem:[#allocation2 + $0xa0] sm:$0xff]
      %v713 = vld [vmem:[#allocation2 + $0xa8] sm:$0xff]
      %v714 = vld [vmem:[#allocation2 + $0xb0] sm:$0xff]
      %v715 = vld [vmem:[#allocation2 + $0xb8] sm:$0xff]
      %v716 = vld [vmem:[#allocation2 + $0xc0] sm:$0xff]
      %v717 = vld [vmem:[#allocation2 + $0xc8] sm:$0xff]
      %v718 = vld [vmem:[#allocation2 + $0xd0] sm:$0xff]
      %v719 = vld [vmem:[#allocation2 + $0xd8] sm:$0xff]
      %v720 = vld [vmem:[#allocation2 + $0xe0] sm:$0xff]
      %v721 = vld [vmem:[#allocation2 + $0xe8] sm:$0xff]
      %v722 = vld [vmem:[#allocation2 + $0xf0] sm:$0xff]
      %v723 = vld [vmem:[#allocation2 + $0xf8] sm:$0xff]
      %v724 = vld [vmem:[%s2] sm:$0x3]
      %v726 = vlaneseq
      %v727 = vshrl.u32 %v726, 7
      %v728 = vsub.s32 0, %v727
      %v729 = vrot.slane %v724, %v728
      %v730 = vlaneseq
      %v731 = vshrl.u32 %v730, 7
      %v732 = vsub.s32 1, %v731
      %v733 = vrot.slane %v724, %v732
      %v736 = vadd.f32 %v692, %v729
      %v737 = vadd.f32 %v693, %v733
      %v738 = vadd.f32 %v694, %v729
      %v739 = vadd.f32 %v695, %v733
      %v740 = vadd.f32 %v696, %v729
      %v741 = vadd.f32 %v697, %v733
      %v742 = vadd.f32 %v698, %v729
      %v743 = vadd.f32 %v699, %v733
      %v744 = vadd.f32 %v700, %v729
      %v745 = vadd.f32 %v701, %v733
      %v746 = vadd.f32 %v702, %v729
      %v747 = vadd.f32 %v703, %v733
      %v748 = vadd.f32 %v704, %v729
      %v749 = vadd.f32 %v705, %v733
      %v750 = vadd.f32 %v706, %v729
      %v751 = vadd.f32 %v707, %v733
      %v752 = vadd.f32 %v708, %v729
      %v753 = vadd.f32 %v709, %v733
      %v754 = vadd.f32 %v710, %v729
      %v755 = vadd.f32 %v711, %v733
      %v756 = vadd.f32 %v712, %v729
      %v757 = vadd.f32 %v713, %v733
      %v758 = vadd.f32 %v714, %v729
      %v759 = vadd.f32 %v715, %v733
      %v760 = vadd.f32 %v716, %v729
      %v761 = vadd.f32 %v717, %v733
      %v762 = vadd.f32 %v718, %v729
      %v763 = vadd.f32 %v719, %v733
      %v764 = vadd.f32 %v720, %v729
      %v765 = vadd.f32 %v721, %v733
      %v766 = vadd.f32 %v722, %v729
      %v767 = vadd.f32 %v723, %v733
      %768 = vst [vmem:[#allocation8] sm:$0xff] %v736
      %769 = vst [vmem:[#allocation8 + $0x8] sm:$0xff] %v737
      %770 = vst [vmem:[#allocation8 + $0x10] sm:$0xff] %v738
      %771 = vst [vmem:[#allocation8 + $0x18] sm:$0xff] %v739
      %772 = vst [vmem:[#allocation8 + $0x20] sm:$0xff] %v740
      %773 = vst [vmem:[#allocation8 + $0x28] sm:$0xff] %v741
      %774 = vst [vmem:[#allocation8 + $0x30] sm:$0xff] %v742
      %775 = vst [vmem:[#allocation8 + $0x38] sm:$0xff] %v743
      %776 = vst [vmem:[#allocation8 + $0x40] sm:$0xff] %v744
      %777 = vst [vmem:[#allocation8 + $0x48] sm:$0xff] %v745
      %778 = vst [vmem:[#allocation8 + $0x50] sm:$0xff] %v746
      %779 = vst [vmem:[#allocation8 + $0x58] sm:$0xff] %v747
      %780 = vst [vmem:[#allocation8 + $0x60] sm:$0xff] %v748
      %781 = vst [vmem:[#allocation8 + $0x68] sm:$0xff] %v749
      %782 = vst [vmem:[#allocation8 + $0x70] sm:$0xff] %v750
      %783 = vst [vmem:[#allocation8 + $0x78] sm:$0xff] %v751
      %784 = vst [vmem:[#allocation8 + $0x80] sm:$0xff] %v752
      %785 = vst [vmem:[#allocation8 + $0x88] sm:$0xff] %v753
      %786 = vst [vmem:[#allocation8 + $0x90] sm:$0xff] %v754
      %787 = vst [vmem:[#allocation8 + $0x98] sm:$0xff] %v755
      %788 = vst [vmem:[#allocation8 + $0xa0] sm:$0xff] %v756
      %789 = vst [vmem:[#allocation8 + $0xa8] sm:$0xff] %v757
      %790 = vst [vmem:[#allocation8 + $0xb0] sm:$0xff] %v758
      %791 = vst [vmem:[#allocation8 + $0xb8] sm:$0xff] %v759
      %792 = vst [vmem:[#allocation8 + $0xc0] sm:$0xff] %v760
      %793 = vst [vmem:[#allocation8 + $0xc8] sm:$0xff] %v761
      %794 = vst [vmem:[#allocation8 + $0xd0] sm:$0xff] %v762
      %795 = vst [vmem:[#allocation8 + $0xd8] sm:$0xff] %v763
      %796 = vst [vmem:[#allocation8 + $0xe0] sm:$0xff] %v764
      %797 = vst [vmem:[#allocation8 + $0xe8] sm:$0xff] %v765
      %798 = vst [vmem:[#allocation8 + $0xf0] sm:$0xff] %v766
      %799 = vst [vmem:[#allocation8 + $0xf8] sm:$0xff] %v767
    $region29: #{tpu_custom_call.1} parent=1 // pred_fallthru
      _
    // Predicated region
    $region30: #{tpu_custom_call.1} parent=1 // pred_check
      _
    $region31: #{tpu_custom_call.1} parent=1 // pred_check_branch
      %801 = sbr.rel (0) target = $region33
    $region32: #{tpu_custom_call.1} parent=1 // pred_region
      %s803 = ssub.s32 4096, 4096
      %804 = vsyncadd [#allocation5], %s803
      %s805 = sshll.u32 [#allocation8], 4
      %s806 = int_to_ptr.vmem [resolvable:$true] %s805
      %811 = dma.vmem_to_hbm [thread:$0]  %s806, 4096, %s3, [#allocation5], 256, 256, 16
    $region33: #{tpu_custom_call.1} parent=1 // pred_fallthru
      _
    // Predicated region
    $region34: #{tpu_custom_call.1} parent=1 // pred_check
      _
    $region35: #{tpu_custom_call.1} parent=1 // pred_check_branch
      %813 = sbr.rel (0) target = $region37
    $region36: #{tpu_custom_call.1} parent=1 // pred_region
      %814 = dma.done [#allocation5], 4096
    $region37: #{tpu_custom_call.1} parent=1 // pred_fallthru
      _
    %815 = vsyncpa [#allocation4], 1
    %816 = vsyncpa [#allocation7], 1
    %817 = vsyncpa [#allocation5], 1

</llo_original>
